<compile_context>
chip_gen: v7x
topology: tpu7x:2x2x1
jax: 0.10.0
libtpu: 0.0.40
codegen_flags: <defaults>
</compile_context>

<pallas_src>
import functools

import numpy as np
import jax
import jax.numpy as jnp
from jax.experimental import pallas as pl
from jax.experimental.pallas import tpu as pltpu

LANE = 128       # channel dims padded to multiples of this (lane-dense stores)
TGT_TILE = 8     # target-node rows per aggregation grid step (accumulator rows)
SRC_TILE = 128   # source-node columns streamed per aggregation grid step
ROW_TILE = 128   # node rows per linear-layer grid step
# TODO(synk): for large graphs, fuse both layers into one pallas_call so the
# adjacency mask is only streamed from HBM once (VMEM permitting).


def _round_up(x, m):
    return ((x + m - 1) // m) * m


# ---------------------------------------------------------------------------
# Kernel 1: node-wise linear  h = x @ W^T + b   (bf16 inputs, f32 accumulate)
# ---------------------------------------------------------------------------
def _linear_kernel(x_ref, w_ref, b_ref, o_ref):
    h = jnp.dot(x_ref[...], w_ref[...], preferred_element_type=jnp.float32)
    o_ref[...] = h + b_ref[...]


def linear(x_bf16, w_t_bf16, b_f32):
    n, cin = x_bf16.shape
    cout = w_t_bf16.shape[1]
    assert n % ROW_TILE == 0 and cout % LANE == 0
    return pl.pallas_call(
        _linear_kernel,
        out_shape=jax.ShapeDtypeStruct((n, cout), jnp.float32),
        grid=(n // ROW_TILE,),
        in_specs=[
            pl.BlockSpec((ROW_TILE, cin), lambda i: (i, 0)),
            pl.BlockSpec((cin, cout), lambda i: (0, 0)),
            pl.BlockSpec((1, cout), lambda i: (0, 0)),
        ],
        out_specs=pl.BlockSpec((ROW_TILE, cout), lambda i: (i, 0)),
        compiler_params=pltpu.CompilerParams(
            dimension_semantics=("parallel",)),
    )(x_bf16, w_t_bf16, b_f32)


# ---------------------------------------------------------------------------
# Kernel 2: streamed max-aggregation over incoming neighbours
#   mask[i, j] = 0.0 if edge j -> i else -inf   (bf16 additive mask)
#   out[i, c]  = max_j (h[j, c] + mask[i, j]),  -inf (no neighbour) -> 0
# ---------------------------------------------------------------------------
def _maxagg_kernel(mask_ref, h_ref, o_ref, acc_ref, *, apply_relu):
    si = pl.program_id(1)

    @pl.when(si == 0)
    def _init():
        acc_ref[...] = jnp.full_like(acc_ref, -jnp.inf)

    # [TGT, SRC, C] masked tile; reduce over the source (middle) axis so the
    # channel axis stays on lanes and no transpose is needed.
    m = mask_ref[...].astype(jnp.float32)                      # [TGT, SRC]
    h = h_ref[...]                                             # [SRC, C]
    cand = jnp.max(h[None, :, :] + m[:, :, None], axis=1)      # [TGT, C]
    acc_ref[...] = jnp.maximum(acc_ref[...], cand)

    @pl.when(si == pl.num_programs(1) - 1)
    def _finalize():
        acc = acc_ref[...]
        # Rows still at -inf had no incoming edge -> PyG max-aggr fill = 0.
        agg = jnp.where(acc > -jnp.inf, acc, 0.0)
        if apply_relu:
            agg = jnp.maximum(agg, 0.0)
        o_ref[...] = agg


def maxagg(neg_mask, h, *, apply_relu):
    n, c = h.shape
    assert neg_mask.shape == (n, n)
    assert n % TGT_TILE == 0 and n % SRC_TILE == 0 and c % LANE == 0
    kernel = functools.partial(_maxagg_kernel, apply_relu=apply_relu)
    return pl.pallas_call(
        kernel,
        out_shape=jax.ShapeDtypeStruct((n, c), jnp.float32),
        grid=(n // TGT_TILE, n // SRC_TILE),
        in_specs=[
            pl.BlockSpec((TGT_TILE, SRC_TILE), lambda ti, si: (ti, si)),
            pl.BlockSpec((SRC_TILE, c), lambda ti, si: (si, 0)),
        ],
        out_specs=pl.BlockSpec((TGT_TILE, c), lambda ti, si: (ti, 0)),
        scratch_shapes=[pltpu.VMEM((TGT_TILE, c), jnp.float32)],
        compiler_params=pltpu.CompilerParams(
            dimension_semantics=("parallel", "arbitrary")),
    )(neg_mask, h)


# ---------------------------------------------------------------------------
# GCN forward = linear -> maxagg(+relu) -> linear -> maxagg
# ---------------------------------------------------------------------------
def prepare_params(params):
    """Zero-pad channel dims to LANE multiples; cast weights to bf16."""
    def prep(w_t, b):
        cin, cout = w_t.shape
        cin_p, cout_p = _round_up(cin, LANE), _round_up(cout, LANE)
        w_p = jnp.zeros((cin_p, cout_p), jnp.float32).at[:cin, :cout].set(w_t)
        b_p = jnp.zeros((1, cout_p), jnp.float32).at[:, :cout].set(b)
        return w_p.astype(jnp.bfloat16), b_p
    w1, b1 = prep(params["w1_t"], params["b1"])
    w2, b2 = prep(params["w2_t"], params["b2"])
    return {"w1_t": w1, "b1": b1, "w2_t": w2, "b2": b2}


def gcn_forward(params_p, x, neg_mask, num_nodes, out_channels):
    """x: [N, Cin] f32; neg_mask: [Np, Np] bf16 additive mask (0 / -inf)."""
    n_pad = neg_mask.shape[0]
    cin = x.shape[1]
    cin_p = params_p["w1_t"].shape[0]
    x_p = jnp.zeros((n_pad, cin_p), jnp.float32).at[:num_nodes, :cin].set(x)

    h1 = linear(x_p.astype(jnp.bfloat16), params_p["w1_t"], params_p["b1"])
    a1 = maxagg(neg_mask, h1, apply_relu=True)          # conv1 + ReLU
    h2 = linear(a1.astype(jnp.bfloat16), params_p["w2_t"], params_p["b2"])
    a2 = maxagg(neg_mask, h2, apply_relu=False)         # conv2
    return a2[:num_nodes, :out_channels]


# ---------------------------------------------------------------------------
# Parameter init (nn.Linear-style) and graph construction
# ---------------------------------------------------------------------------
def init_params(key, in_channels, hidden_channels, out_channels):
    k1, k2, k3, k4 = jax.random.split(key, 4)
    s1 = 1.0 / np.sqrt(in_channels)
    s2 = 1.0 / np.sqrt(hidden_channels)
    return {
        "w1_t": jax.random.uniform(k1, (in_channels, hidden_channels),
                                   jnp.float32, -s1, s1),
        "b1": jax.random.uniform(k2, (1, hidden_channels), jnp.float32, -s1, s1),
        "w2_t": jax.random.uniform(k3, (hidden_channels, out_channels),
                                   jnp.float32, -s2, s2),
        "b2": jax.random.uniform(k4, (1, out_channels), jnp.float32, -s2, s2),
    }


def edge_index_to_masks(edge_index, num_nodes, num_nodes_padded):
    """Returns (bf16 additive mask [Np,Np]: 0=edge j->i, -inf otherwise,
    dense 0/1 f32 adjacency [N,N] for the pure-JAX reference)."""
    adj = np.zeros((num_nodes_padded, num_nodes_padded), dtype=np.float32)
    if edge_index.size:
        src, dst = np.asarray(edge_index)
        adj[dst, src] = 1.0
    neg = np.where(adj > 0, 0.0, -np.inf).astype(np.float32)
    return (jnp.asarray(neg, dtype=jnp.bfloat16),
            jnp.asarray(adj[:num_nodes, :num_nodes]))


def gcn_reference(params, x, adj):
    """Pure-JAX reference mirroring the kernel semantics (bf16 matmuls)."""
    def layer(xin, w_t, b, relu):
        h = jnp.dot(xin.astype(jnp.bfloat16), w_t.astype(jnp.bfloat16),
                    preferred_element_type=jnp.float32) + b
        masked = jnp.where(adj[:, :, None] > 0, h[None, :, :], -jnp.inf)
        agg = jnp.max(masked, axis=1)
        agg = jnp.where(jnp.sum(adj, axis=1, keepdims=True) > 0, agg, 0.0)
        return jnp.maximum(agg, 0.0) if relu else agg
    h = layer(x, params["w1_t"], params["b1"], True)
    return layer(h, params["w2_t"], params["b2"], False)


if __name__ == "__main__":
    N = 200                       # graph nodes (padded to 256 internally)
    IN_C, HID_C, OUT_C = 4, 32, 16

    key = jax.random.PRNGKey(0)
    kx, kp = jax.random.split(key)
    x = jax.random.normal(kx, (N, IN_C), dtype=jnp.float32)

    # Deterministic graph: bidirectional ring over nodes 0..189 plus some
    # long-range edges; nodes 190..199 are isolated (tests the 0-fill path).
    ring_n = 190
    fwd = [(i, (i + 1) % ring_n) for i in range(ring_n)]
    extra = [(i, (i * 7 + 3) % ring_n) for i in range(0, ring_n, 5)]
    edges = fwd + [(j, i) for (i, j) in fwd] + extra
    edge_index = np.array(edges, dtype=np.int64).T       # [2, E] (src, dst)

    n_pad = _round_up(N, max(SRC_TILE, ROW_TILE))
    neg_mask, adj = edge_index_to_masks(edge_index, N, n_pad)

    params = init_params(kp, IN_C, HID_C, OUT_C)
    params_p = prepare_params(params)

    out = gcn_forward(params_p, x, neg_mask, N, OUT_C)
    out = jax.block_until_ready(out)

    ref = gcn_reference(params, x, adj)
    np.testing.assert_allclose(np.asarray(out), np.asarray(ref),
                               rtol=2e-2, atol=2e-2)
    print("KERNEL_OK")
</pallas_src>

<mosaic_0001>
module attributes {stable_mosaic.version = 11 : i64} {
  func.func @_linear_kernel(%arg0: i32, %arg1: memref<128x128xbf16, #tpu.memory_space<vmem>>, %arg2: memref<128x128xbf16, #tpu.memory_space<vmem>>, %arg3: memref<1x128xf32, #tpu.memory_space<vmem>>, %arg4: memref<128x128xf32, #tpu.memory_space<vmem>>) attributes {dimension_semantics = [#tpu.dimension_semantics<parallel>], iteration_bounds = array<i64: 2>, scalar_prefetch = 0 : i64, scratch_operands = 0 : i64, tpu.core_type = #tpu.core_type<tc>, window_params = [{transform_indices = @transform_0, window_bounds = array<i64: 128, 128>}, {pipeline_mode = #tpu.pipeline_mode<synchronous>, transform_indices = @transform_1, window_bounds = array<i64: 128, 128>}, {pipeline_mode = #tpu.pipeline_mode<synchronous>, transform_indices = @transform_2, window_bounds = array<i64: 1, 128>}, {transform_indices = @transform_3, window_bounds = array<i64: 128, 128>}]} {
    %c0 = arith.constant 0 : index
    %c0_0 = arith.constant 0 : index
    %0 = vector.load %arg1[%c0, %c0_0] : memref<128x128xbf16, #tpu.memory_space<vmem>>, vector<128x128xbf16>
    %c0_1 = arith.constant 0 : index
    %c0_2 = arith.constant 0 : index
    %1 = vector.load %arg2[%c0_1, %c0_2] : memref<128x128xbf16, #tpu.memory_space<vmem>>, vector<128x128xbf16>
    %cst = arith.constant dense<0.000000e+00> : vector<128x128xf32>
    %2 = tpu.matmul %0, %1, %cst {dimension_numbers = #tpu.dot_dimension_numbers<[1], [0], [0], [1], [0, 0, 1, 1], [], []>} : vector<128x128xbf16>, vector<128x128xbf16>, vector<128x128xf32> -> vector<128x128xf32>
    %c0_3 = arith.constant 0 : index
    %c0_4 = arith.constant 0 : index
    %3 = vector.load %arg3[%c0_3, %c0_4] : memref<1x128xf32, #tpu.memory_space<vmem>>, vector<1x128xf32>
    %4 = vector.broadcast %3 : vector<1x128xf32> to vector<128x128xf32>
    %5 = arith.addf %2, %4 : vector<128x128xf32>
    %c0_5 = arith.constant 0 : index
    %c0_6 = arith.constant 0 : index
    %6 = vector.load %arg4[%c0_5, %c0_6] : memref<128x128xf32, #tpu.memory_space<vmem>>, vector<128x128xf32>
    tpu.vector_store %arg4[%c0_5, %c0_6], %5 {strides = array<i32>} : memref<128x128xf32, #tpu.memory_space<vmem>>, vector<128x128xf32>,
    return
  }
  func.func @transform_0(%arg0: i32) -> (i32, i32) {
    %c0_i32 = arith.constant 0 : i32
    %c0_i32_0 = arith.constant 0 : i32
    return %arg0, %c0_i32 : i32, i32
  }
  func.func @transform_1(%arg0: i32) -> (i32, i32) {
    %c0_i32 = arith.constant 0 : i32
    %c0_i32_0 = arith.constant 0 : i32
    %c0_i32_1 = arith.constant 0 : i32
    return %c0_i32, %c0_i32_0 : i32, i32
  }
  func.func @transform_2(%arg0: i32) -> (i32, i32) {
    %c0_i32 = arith.constant 0 : i32
    %c0_i32_0 = arith.constant 0 : i32
    %c0_i32_1 = arith.constant 0 : i32
    return %c0_i32, %c0_i32_0 : i32, i32
  }
  func.func @transform_3(%arg0: i32) -> (i32, i32) {
    %c0_i32 = arith.constant 0 : i32
    %c0_i32_0 = arith.constant 0 : i32
    return %arg0, %c0_i32 : i32, i32
  }
}

</mosaic_0001>

<llo_original>
// kernel: tpu_custom_call.1
$region0: #{tpu_custom_call.1}
  #allocation0 [shape = 'u32[]', space=smem, size = 0x4, offset = 0x4, fixed_abs, tag = 'smem constant byte address 0x4 - core index']
  #allocation1 [shape = 'u32[144,128]{1,0:T(1,128)}', space=vmem, size = 0x12000, scoped, tag = 'internal scratch']
  %s0 = inlined_call_operand.hbm [shape: bf16[256,128], index: 0, kind: input, shape index: {}]
  %s1 = inlined_call_operand.hbm [shape: bf16[128,128], index: 1, kind: input, shape index: {}]
  %s2 = inlined_call_operand.vmem [shape: f32[1,128], index: 2, kind: input, shape index: {}]
  %s3 = inlined_call_operand.hbm [shape: f32[256,128], index: 3, kind: output, shape index: {}]
  %s4 = sld [smem:[#allocation0]]
  $region53: #{tpu_custom_call.1} parent=0
    _
  %s6 = ssub.s32 1, %s4
  %s7 = scalar_select 0, %s6, %s4
  $region1: #{tpu_custom_call.1} parent=0
    #allocation2 [shape = 'u8[65536]{0}', space=vmem, size = 0x10000, scoped, tag = 'input window, operand 0']
    #allocation3 [shape = 's32[2]{0}', space=sflag, size = 0x8, scoped, tag = 'scoped memory for tpu_custom_call.1']
    #allocation4 [shape = 's32[2]{0}', space=sflag, size = 0x8, scoped, tag = 'scoped memory for tpu_custom_call.1']
    #allocation5 [shape = 'u8[32768]{0}', space=vmem, size = 0x8000, scoped, tag = 'input window, operand 1, single buffered']
    #allocation6 [shape = 's32[1]{0}', space=sflag, size = 0x4, scoped, tag = 'scoped memory for tpu_custom_call.1']
    #allocation7 [shape = 'u8[131072]{0}', space=vmem, size = 0x20000, scoped, tag = 'output window, operand 0']
    %8 = vsyncpa [#allocation3], 0
    %s9 = scalar_lea.sflag [#allocation3], 1
    %10 = vsyncpa %s9, 0
    %11 = vsyncpa [#allocation6], 0
    %12 = vsyncpa [#allocation4], 0
    %s13 = scalar_lea.sflag [#allocation4], 1
    %14 = vsyncpa %s13, 0
    loop: start=0, step=1, limit=4
    $region2: #{tpu_custom_call.1} parent=1 // loop_pre_header
      _
    $region3: #{tpu_custom_call.1} parent=1 // loop_header
      %s16 = sphi 0, %s20
      %p17 = scmp.ge.s32.totalorder %s16, 4
      %s26 = sphi 0, %s28
      %s29 = sphi 0, %s26
      %s30 = sphi 0, %s29
      %s46 = sphi 0, %s30
      %s50 = sphi 0, %s50
      %s52 = sphi 0, %s50
      %s53 = sphi 0, %s52
      %s67 = sphi 0, %s53
      %s71 = sphi 0, %s71
      %s73 = sphi 0, %s71
      %s74 = sphi 0, %s73
      %s88 = sphi 0, %s74
      %s94 = sphi 0, %s96
      %s97 = sphi 0, %s94
      %s98 = sphi 0, %s97
      %s114 = sphi 0, %s98
    $region4: #{tpu_custom_call.1} parent=1 // loop_header_branch
      %19 = sbr.rel (%p17) target = $region8
    $region5: #{tpu_custom_call.1} parent=1 // loop_body
      %s21 = ssub.s32 %s16, 1
      %s22 = ssub.s32 %s16, 2
      %s23 = sadd.s32 %s16, 1
      %s24 = ssub.s32 %s16, %s23
      %p25 = scmp.eq.s32.totalorder %s24, 0
      %s27 = sadd.s32 %s26, 1
      %s28 = scalar_select %p25, %s26, %s27
      %p31 = pneg %p25
      %p32 = scmp.eq.s32.totalorder %s16, 1
      %p33 = por %p31, %p32
      %p34 = scmp.ne.s32.totalorder %s26, %s29
      %p35 = scmp.eq.s32.totalorder %s16, 0
      %p36 = por %p34, %p35
      %p37 = scmp.ne.s32.totalorder %s26, %s29
      %p38 = scmp.eq.s32.totalorder %s21, 1
      %p39 = por %p37, %p38
      %p40 = scmp.ne.s32.totalorder %s29, %s30
      %p41 = scmp.eq.s32.totalorder %s21, 0
      %p42 = por %p40, %p41
      %p43 = scmp.ne.s32.totalorder %s29, %s30
      %p44 = scmp.eq.s32.totalorder %s22, 1
      %p45 = por %p43, %p44
      %p47 = scmp.ne.s32.totalorder %s30, %s46
      %p48 = scmp.eq.s32.totalorder %s22, 0
      %p49 = por %p47, %p48
      %s51 = sadd.s32 %s50, 1
      %p54 = scmp.eq.s32.totalorder %s16, 1
      %p55 = scmp.ne.s32.totalorder %s50, %s52
      %p56 = scmp.eq.s32.totalorder %s16, 0
      %p57 = por %p55, %p56
      %p58 = scmp.ne.s32.totalorder %s50, %s52
      %p59 = scmp.eq.s32.totalorder %s21, 1
      %p60 = por %p58, %p59
      %p61 = scmp.ne.s32.totalorder %s52, %s53
      %p62 = scmp.eq.s32.totalorder %s21, 0
      %p63 = por %p61, %p62
      %p64 = scmp.ne.s32.totalorder %s52, %s53
      %p65 = scmp.eq.s32.totalorder %s22, 1
      %p66 = por %p64, %p65
      %p68 = scmp.ne.s32.totalorder %s53, %s67
      %p69 = scmp.eq.s32.totalorder %s22, 0
      %p70 = por %p68, %p69
      %s72 = sadd.s32 %s71, 1
      %p75 = scmp.eq.s32.totalorder %s16, 1
      %p76 = scmp.ne.s32.totalorder %s71, %s73
      %p77 = scmp.eq.s32.totalorder %s16, 0
      %p78 = por %p76, %p77
      %p79 = scmp.ne.s32.totalorder %s71, %s73
      %p80 = scmp.eq.s32.totalorder %s21, 1
      %p81 = por %p79, %p80
      %p82 = scmp.ne.s32.totalorder %s73, %s74
      %p83 = scmp.eq.s32.totalorder %s21, 0
      %p84 = por %p82, %p83
      %p85 = scmp.ne.s32.totalorder %s73, %s74
      %p86 = scmp.eq.s32.totalorder %s22, 1
      %p87 = por %p85, %p86
      %p89 = scmp.ne.s32.totalorder %s74, %s88
      %p90 = scmp.eq.s32.totalorder %s22, 0
      %p91 = por %p89, %p90
      %s92 = ssub.s32 %s16, %s23
      %p93 = scmp.eq.s32.totalorder %s92, 0
      %s95 = sadd.s32 %s94, 1
      %s96 = scalar_select %p93, %s94, %s95
      %p99 = pneg %p93
      %p100 = scmp.eq.s32.totalorder %s16, 1
      %p101 = por %p99, %p100
      %p102 = scmp.ne.s32.totalorder %s94, %s97
      %p103 = scmp.eq.s32.totalorder %s16, 0
      %p104 = por %p102, %p103
      %p105 = scmp.ne.s32.totalorder %s94, %s97
      %p106 = scmp.eq.s32.totalorder %s21, 1
      %p107 = por %p105, %p106
      %p108 = scmp.ne.s32.totalorder %s97, %s98
      %p109 = scmp.eq.s32.totalorder %s21, 0
      %p110 = por %p108, %p109
      %p111 = scmp.ne.s32.totalorder %s97, %s98
      %p112 = scmp.eq.s32.totalorder %s22, 1
      %p113 = por %p111, %p112
      %p115 = scmp.ne.s32.totalorder %s98, %s114
      %p116 = scmp.eq.s32.totalorder %s22, 0
      %p117 = por %p115, %p116
      %p118 = scmp.le.s32.totalorder 1, %s16
      %p119 = scmp.lt.s32.totalorder %s16, 3
      %p120 = pnand %p118, %p119
      %p121 = pneg %p120
      // Predicated region
      $region9: #{tpu_custom_call.1} parent=5 // pred_check
        _
      $region10: #{tpu_custom_call.1} parent=5 // pred_check_branch
        %123 = sbr.rel (%p120) target = $region12
      $region11: #{tpu_custom_call.1} parent=5 // pred_region
        %s124 = ssub.s32 %s16, 1
        // Predicated region
        $region13: #{tpu_custom_call.1} parent=11 // pred_check
          %p125 = pneg %p63
        $region14: #{tpu_custom_call.1} parent=11 // pred_check_branch
          %127 = sbr.rel (%p125) target = $region16
        $region15: #{tpu_custom_call.1} parent=11 // pred_region
          %s129 = ssub.s32 1024, 1024
          %130 = vsyncadd [#allocation6], %s129
          %s131 = sshll.u32 [#allocation5], 4
          %s132 = int_to_ptr.vmem [resolvable:$true] %s131
          %137 = dma.hbm_to_vmem [thread:$0]  %s1, 1024, %s132, [#allocation6], 64, 64, 4
        $region16: #{tpu_custom_call.1} parent=11 // pred_fallthru
          _
        // Predicated region
        $region17: #{tpu_custom_call.1} parent=11 // pred_check
          %p138 = pneg %p84
        $region18: #{tpu_custom_call.1} parent=11 // pred_check_branch
          %140 = sbr.rel (%p138) target = $region20
        $region19: #{tpu_custom_call.1} parent=11 // pred_region
          _
        $region20: #{tpu_custom_call.1} parent=11 // pred_fallthru
          _
      $region12: #{tpu_custom_call.1} parent=5 // pred_fallthru
        _
      %p141 = scmp.lt.s32.totalorder %s16, 2
      // Predicated region
      $region21: #{tpu_custom_call.1} parent=5 // pred_check
        %p142 = pneg %p141
      $region22: #{tpu_custom_call.1} parent=5 // pred_check_branch
        %144 = sbr.rel (%p142) target = $region24
      $region23: #{tpu_custom_call.1} parent=5 // pred_region
        // Predicated region
        $region25: #{tpu_custom_call.1} parent=23 // pred_check
          %p145 = pneg %p36
        $region26: #{tpu_custom_call.1} parent=23 // pred_check_branch
          %147 = sbr.rel (%p145) target = $region28
        $region27: #{tpu_custom_call.1} parent=23 // pred_region
          %s148 = sand.u32 %s26, 1
          %s149 = scalar_lea.sflag [#allocation3], %s148
          %s150 = sand.u32 %s26, 1
          %s151 = smul.addr %s150, 64
          %s152 = scalar_lea.vmem [#allocation2], %s151
          %s153 = smul.u32 16, %s16
          %s155 = ssub.s32 1024, 1024
          %156 = vsyncadd %s149, %s155
          %s157 = smul.addr %s153, 64
          %s158 = scalar_lea.hbm %s0, %s157
          %s159 = sshll.u32 %s152, 4
          %s160 = int_to_ptr.vmem [resolvable:$true] %s159
          %165 = dma.hbm_to_vmem [thread:$0]  %s158, 1024, %s160, %s149, 64, 64, 4
        $region28: #{tpu_custom_call.1} parent=23 // pred_fallthru
          _
      $region24: #{tpu_custom_call.1} parent=5 // pred_fallthru
        _
      %p166 = scmp.le.s32.totalorder 1, %s16
      %p167 = scmp.lt.s32.totalorder %s16, 3
      %p168 = pnand %p166, %p167
      %p169 = pneg %p168
      // Predicated region
      $region29: #{tpu_custom_call.1} parent=5 // pred_check
        _
      $region30: #{tpu_custom_call.1} parent=5 // pred_check_branch
        %171 = sbr.rel (%p168) target = $region32
      $region31: #{tpu_custom_call.1} parent=5 // pred_region
        %s172 = ssub.s32 %s16, 1
        %s173 = sand.u32 %s29, 1
        %s174 = scalar_lea.sflag [#allocation3], %s173
        %s175 = sand.u32 %s29, 1
        %s176 = smul.addr %s175, 64
        %s177 = scalar_lea.vmem [#allocation2], %s176
        // Predicated region
        $region33: #{tpu_custom_call.1} parent=31 // pred_check
          %p178 = pneg %p42
        $region34: #{tpu_custom_call.1} parent=31 // pred_check_branch
          %180 = sbr.rel (%p178) target = $region36
        $region35: #{tpu_custom_call.1} parent=31 // pred_region
          %181 = dma.done %s174, 1024
        $region36: #{tpu_custom_call.1} parent=31 // pred_fallthru
          _
        // Predicated region
        $region37: #{tpu_custom_call.1} parent=31 // pred_check
          %p182 = pneg %p63
        $region38: #{tpu_custom_call.1} parent=31 // pred_check_branch
          %184 = sbr.rel (%p182) target = $region40
        $region39: #{tpu_custom_call.1} parent=31 // pred_region
          %185 = dma.done [#allocation6], 1024
        $region40: #{tpu_custom_call.1} parent=31 // pred_fallthru
          _
        %s186 = sand.u32 %s29, 1
        %s187 = scalar_lea.sflag [#allocation3], %s186
        %s188 = sand.u32 %s29, 1
        %s189 = smul.addr %s188, 64
        %s190 = scalar_lea.vmem [#allocation2], %s189
        %p191 = pneg %p42
        %p192 = pneg %p39
        %p193 = pneg %p63
        %p194 = pneg %p60
        %p195 = pneg %p84
        %p196 = pneg %p81
        %p197 = pneg %p110
        %p198 = pneg %p107
        %s199 = sand.u32 %s97, 1
        %s200 = scalar_lea.sflag [#allocation4], %s199
        %s201 = sand.u32 %s97, 1
        %s202 = smul.addr %s201, 128
        %s203 = scalar_lea.vmem [#allocation7], %s202
        %s204 = smul.u32 16, %s21
        %s205 = smul.u32 16, %s21
        %v207 = vld [vmem:[%s177] sm:$0xf]
        %v208 = vld [vmem:[%s177 + $0x4] sm:$0xf]
        %v209 = vld [vmem:[%s177 + $0x8] sm:$0xf]
        %v210 = vld [vmem:[%s177 + $0xc] sm:$0xf]
        %v211 = vld [vmem:[%s177 + $0x10] sm:$0xf]
        %v212 = vld [vmem:[%s177 + $0x14] sm:$0xf]
        %v213 = vld [vmem:[%s177 + $0x18] sm:$0xf]
        %v214 = vld [vmem:[%s177 + $0x1c] sm:$0xf]
        %v215 = vld [vmem:[%s177 + $0x20] sm:$0xf]
        %v216 = vld [vmem:[%s177 + $0x24] sm:$0xf]
        %v217 = vld [vmem:[%s177 + $0x28] sm:$0xf]
        %v218 = vld [vmem:[%s177 + $0x2c] sm:$0xf]
        %v219 = vld [vmem:[%s177 + $0x30] sm:$0xf]
        %v220 = vld [vmem:[%s177 + $0x34] sm:$0xf]
        %v221 = vld [vmem:[%s177 + $0x38] sm:$0xf]
        %v222 = vld [vmem:[%s177 + $0x3c] sm:$0xf]
        %v223 = vld [vmem:[#allocation5] sm:$0xf]
        %v224 = vld [vmem:[#allocation5 + $0x4] sm:$0xf]
        %v225 = vld [vmem:[#allocation5 + $0x8] sm:$0xf]
        %v226 = vld [vmem:[#allocation5 + $0xc] sm:$0xf]
        %v227 = vld [vmem:[#allocation5 + $0x10] sm:$0xf]
        %v228 = vld [vmem:[#allocation5 + $0x14] sm:$0xf]
        %v229 = vld [vmem:[#allocation5 + $0x18] sm:$0xf]
        %v230 = vld [vmem:[#allocation5 + $0x1c] sm:$0xf]
        %v231 = vld [vmem:[#allocation5 + $0x20] sm:$0xf]
        %v232 = vld [vmem:[#allocation5 + $0x24] sm:$0xf]
        %v233 = vld [vmem:[#allocation5 + $0x28] sm:$0xf]
        %v234 = vld [vmem:[#allocation5 + $0x2c] sm:$0xf]
        %v235 = vld [vmem:[#allocation5 + $0x30] sm:$0xf]
        %v236 = vld [vmem:[#allocation5 + $0x34] sm:$0xf]
        %v237 = vld [vmem:[#allocation5 + $0x38] sm:$0xf]
        %v238 = vld [vmem:[#allocation5 + $0x3c] sm:$0xf]
        %v239 = vld [vmem:[%s2] sm:$0x1]
        %v241 = vlaneseq
        %v242 = vshrl.u32 %v241, 7
        %v243 = vsub.s32 0, %v242
        %v244 = vrot.slane %v239, %v243
        %v262 = vunpack.c.l.b16 %v207
        %v263 = vunpack.c.l.b16 %v208
        %v264 = vunpack.c.l.b16 %v209
        %v265 = vunpack.c.l.b16 %v210
        %v266 = vunpack.c.l.b16 %v211
        %v267 = vunpack.c.l.b16 %v212
        %v268 = vunpack.c.l.b16 %v213
        %v269 = vunpack.c.l.b16 %v214
        %v270 = vunpack.c.l.b16 %v215
        %v271 = vunpack.c.l.b16 %v216
        %v272 = vunpack.c.l.b16 %v217
        %v273 = vunpack.c.l.b16 %v218
        %v274 = vunpack.c.l.b16 %v219
        %v275 = vunpack.c.l.b16 %v220
        %v276 = vunpack.c.l.b16 %v221
        %v277 = vunpack.c.l.b16 %v222
        %v278 = vpack.c.b16 %v263, %v262
        %v279 = vpack.c.b16 %v265, %v264
        %v280 = vpack.c.b16 %v267, %v266
        %v281 = vpack.c.b16 %v269, %v268
        %v282 = vpack.c.b16 %v271, %v270
        %v283 = vpack.c.b16 %v273, %v272
        %v284 = vpack.c.b16 %v275, %v274
        %v285 = vpack.c.b16 %v277, %v276
        %v310 = vunpack.c.l.b16 %v223
        %v311 = vunpack.c.l.b16 %v224
        %v312 = vunpack.c.l.b16 %v225
        %v313 = vunpack.c.l.b16 %v226
        %v314 = vunpack.c.l.b16 %v227
        %v315 = vunpack.c.l.b16 %v228
        %v316 = vunpack.c.l.b16 %v229
        %v317 = vunpack.c.l.b16 %v230
        %v318 = vunpack.c.l.b16 %v231
        %v319 = vunpack.c.l.b16 %v232
        %v320 = vunpack.c.l.b16 %v233
        %v321 = vunpack.c.l.b16 %v234
        %v322 = vunpack.c.l.b16 %v235
        %v323 = vunpack.c.l.b16 %v236
        %v324 = vunpack.c.l.b16 %v237
        %v325 = vunpack.c.l.b16 %v238
        %v326 = vpack.c.b16 %v311, %v310
        %v327 = vpack.c.b16 %v313, %v312
        %v328 = vpack.c.b16 %v315, %v314
        %v329 = vpack.c.b16 %v317, %v316
        %v330 = vpack.c.b16 %v319, %v318
        %v331 = vpack.c.b16 %v321, %v320
        %v332 = vpack.c.b16 %v323, %v322
        %v333 = vpack.c.b16 %v325, %v324
        %342 = vmatprep.subr.bf16.mxu0 0
        %343 = vmatpush1.bf16.msra.mxu0 %v326
        %344 = vmatprep.subr.bf16.mxu0 0
        %345 = vmatpush1.bf16.msra.mxu0 %v327
        %346 = vmatprep.subr.bf16.mxu0 0
        %347 = vmatpush1.bf16.msra.mxu0 %v328
        %348 = vmatprep.subr.bf16.mxu0 0
        %349 = vmatpush1.bf16.msra.mxu0 %v329
        %350 = vmatprep.subr.bf16.mxu0 0
        %351 = vmatpush1.bf16.msra.mxu0 %v330
        %352 = vmatprep.subr.bf16.mxu0 0
        %353 = vmatpush1.bf16.msra.mxu0 %v331
        %354 = vmatprep.subr.bf16.mxu0 0
        %355 = vmatpush1.bf16.msra.mxu0 %v332
        %356 = vmatprep.subr.bf16.mxu0 0
        %357 = vmatpush1.bf16.msra.mxu0 %v333
        %358 = vmatprep.subr.bf16.mxu0 0
        %359 = vmatpush1.bf16.msra.mxu0 0
        %360 = vmatprep.subr.bf16.mxu0 0
        %361 = vmatpush1.bf16.msra.mxu0 0
        %362 = vmatprep.subr.bf16.mxu0 0
        %363 = vmatpush1.bf16.msra.mxu0 0
        %364 = vmatprep.subr.bf16.mxu0 0
        %365 = vmatpush1.bf16.msra.mxu0 0
        %366 = vmatprep.subr.bf16.mxu0 0
        %367 = vmatpush1.bf16.msra.mxu0 0
        %368 = vmatprep.subr.bf16.mxu0 0
        %369 = vmatpush1.bf16.msra.mxu0 0
        %370 = vmatprep.subr.bf16.mxu0 0
        %371 = vmatpush1.bf16.msra.mxu0 0
        %372 = vmatprep.subr.bf16.mxu0 0
        %373 = vmatpush1.bf16.msra.mxu0 0
        %374 = vmatprep.mubr.bf16.mxu0 0
        %375 = vmatmul.mubr.bf16.gmra.mrb[0].mxu0 %v278
        %v376 = vpop.f32.mrb[0].mxu0
        %v377 = vadd.f32 %v244, %v376
        %v378 = vpop.f32.mrb[0].mxu0
        %v379 = vpop.f32.mrb[0].mxu0
        %v380 = vadd.f32 %v244, %v379
        %v381 = vpop.f32.mrb[0].mxu0
        %382 = vmatprep.mubr.bf16.mxu0 0
        %383 = vmatmul.mubr.bf16.gmra.mrb[0].mxu0 %v279
        %v384 = vpop.f32.mrb[0].mxu0
        %v385 = vadd.f32 %v244, %v384
        %v386 = vpop.f32.mrb[0].mxu0
        %v387 = vpop.f32.mrb[0].mxu0
        %v388 = vadd.f32 %v244, %v387
        %v389 = vpop.f32.mrb[0].mxu0
        %390 = vmatprep.mubr.bf16.mxu0 0
        %391 = vmatmul.mubr.bf16.gmra.mrb[0].mxu0 %v280
        %v392 = vpop.f32.mrb[0].mxu0
        %v393 = vadd.f32 %v244, %v392
        %v394 = vpop.f32.mrb[0].mxu0
        %v395 = vpop.f32.mrb[0].mxu0
        %v396 = vadd.f32 %v244, %v395
        %v397 = vpop.f32.mrb[0].mxu0
        %398 = vmatprep.mubr.bf16.mxu0 0
        %399 = vmatmul.mubr.bf16.gmra.mrb[0].mxu0 %v281
        %v400 = vpop.f32.mrb[0].mxu0
        %v401 = vadd.f32 %v244, %v400
        %v402 = vpop.f32.mrb[0].mxu0
        %v403 = vpop.f32.mrb[0].mxu0
        %v404 = vadd.f32 %v244, %v403
        %v405 = vpop.f32.mrb[0].mxu0
        %406 = vmatprep.mubr.bf16.mxu0 0
        %407 = vmatmul.mubr.bf16.gmra.mrb[0].mxu0 %v282
        %v408 = vpop.f32.mrb[0].mxu0
        %v409 = vadd.f32 %v244, %v408
        %v410 = vpop.f32.mrb[0].mxu0
        %v411 = vpop.f32.mrb[0].mxu0
        %v412 = vadd.f32 %v244, %v411
        %v413 = vpop.f32.mrb[0].mxu0
        %414 = vmatprep.mubr.bf16.mxu0 0
        %415 = vmatmul.mubr.bf16.gmra.mrb[0].mxu0 %v283
        %v416 = vpop.f32.mrb[0].mxu0
        %v417 = vadd.f32 %v244, %v416
        %v418 = vpop.f32.mrb[0].mxu0
        %v419 = vpop.f32.mrb[0].mxu0
        %v420 = vadd.f32 %v244, %v419
        %v421 = vpop.f32.mrb[0].mxu0
        %422 = vmatprep.mubr.bf16.mxu0 0
        %423 = vmatmul.mubr.bf16.gmra.mrb[0].mxu0 %v284
        %v424 = vpop.f32.mrb[0].mxu0
        %v425 = vadd.f32 %v244, %v424
        %v426 = vpop.f32.mrb[0].mxu0
        %v427 = vpop.f32.mrb[0].mxu0
        %v428 = vadd.f32 %v244, %v427
        %v429 = vpop.f32.mrb[0].mxu0
        %430 = vmatprep.mubr.bf16.mxu0 0
        %431 = vmatmul.mubr.bf16.gmra.mrb[0].mxu0 %v285
        %v432 = vpop.f32.mrb[0].mxu0
        %v433 = vadd.f32 %v244, %v432
        %v434 = vpop.f32.mrb[0].mxu0
        %v435 = vpop.f32.mrb[0].mxu0
        %v436 = vadd.f32 %v244, %v435
        %v437 = vpop.f32.mrb[0].mxu0
        %438 = vdwg.mxu0
        %439 = vst [vmem:[%s203] sm:$0xff] %v377
        %440 = vst [vmem:[%s203 + $0x8] sm:$0xff] %v380
        %441 = vst [vmem:[%s203 + $0x10] sm:$0xff] %v385
        %442 = vst [vmem:[%s203 + $0x18] sm:$0xff] %v388
        %443 = vst [vmem:[%s203 + $0x20] sm:$0xff] %v393
        %444 = vst [vmem:[%s203 + $0x28] sm:$0xff] %v396
        %445 = vst [vmem:[%s203 + $0x30] sm:$0xff] %v401
        %446 = vst [vmem:[%s203 + $0x38] sm:$0xff] %v404
        %447 = vst [vmem:[%s203 + $0x40] sm:$0xff] %v409
        %448 = vst [vmem:[%s203 + $0x48] sm:$0xff] %v412
        %449 = vst [vmem:[%s203 + $0x50] sm:$0xff] %v417
        %450 = vst [vmem:[%s203 + $0x58] sm:$0xff] %v420
        %451 = vst [vmem:[%s203 + $0x60] sm:$0xff] %v425
        %452 = vst [vmem:[%s203 + $0x68] sm:$0xff] %v428
        %453 = vst [vmem:[%s203 + $0x70] sm:$0xff] %v433
        %454 = vst [vmem:[%s203 + $0x78] sm:$0xff] %v436
        %s455 = sand.u32 %s97, 1
        %s456 = scalar_lea.sflag [#allocation4], %s455
        %s457 = sand.u32 %s97, 1
        %s458 = smul.addr %s457, 128
        %s459 = scalar_lea.vmem [#allocation7], %s458
        // Predicated region
        $region41: #{tpu_custom_call.1} parent=31 // pred_check
          %p460 = pneg %p107
        $region42: #{tpu_custom_call.1} parent=31 // pred_check_branch
          %462 = sbr.rel (%p460) target = $region44
        $region43: #{tpu_custom_call.1} parent=31 // pred_region
          %s463 = smul.u32 16, %s21
          %s465 = ssub.s32 2048, 2048
          %466 = vsyncadd %s456, %s465
          %s467 = smul.addr %s463, 128
          %s468 = scalar_lea.hbm %s3, %s467
          %s469 = sshll.u32 %s459, 4
          %s470 = int_to_ptr.vmem [resolvable:$true] %s469
          %475 = dma.vmem_to_hbm [thread:$0]  %s470, 2048, %s468, %s456, 128, 128, 8
        $region44: #{tpu_custom_call.1} parent=31 // pred_fallthru
          _
      $region32: #{tpu_custom_call.1} parent=5 // pred_fallthru
        _
      %p476 = scmp.le.s32.totalorder 2, %s16
      // Predicated region
      $region45: #{tpu_custom_call.1} parent=5 // pred_check
        %p477 = pneg %p476
      $region46: #{tpu_custom_call.1} parent=5 // pred_check_branch
        %479 = sbr.rel (%p477) target = $region48
      $region47: #{tpu_custom_call.1} parent=5 // pred_region
        %s480 = ssub.s32 %s16, 2
        // Predicated region
        $region49: #{tpu_custom_call.1} parent=47 // pred_check
          %p481 = pneg %p113
        $region50: #{tpu_custom_call.1} parent=47 // pred_check_branch
          %483 = sbr.rel (%p481) target = $region52
        $region51: #{tpu_custom_call.1} parent=47 // pred_region
          %s484 = sand.u32 %s98, 1
          %s485 = scalar_lea.sflag [#allocation4], %s484
          %s486 = sand.u32 %s98, 1
          %s487 = smul.addr %s486, 128
          %s488 = scalar_lea.vmem [#allocation7], %s487
          %489 = dma.done %s485, 2048
        $region52: #{tpu_custom_call.1} parent=47 // pred_fallthru
          _
      $region48: #{tpu_custom_call.1} parent=5 // pred_fallthru
        _
    $region6: #{tpu_custom_call.1} parent=1 // loop_footer
      %s20 = sadd.s32 1, %s16
    $region7: #{tpu_custom_call.1} parent=1 // loop_footer_branch
      %15 = sbr.rel target = $region3
    $region8: #{tpu_custom_call.1} parent=1 // loop_exit
      _
    %490 = vsyncpa [#allocation3], 1
    %s491 = scalar_lea.sflag [#allocation3], 1
    %492 = vsyncpa %s491, 1
    %493 = vsyncpa [#allocation6], 1
    %494 = vsyncpa [#allocation4], 1
    %s495 = scalar_lea.sflag [#allocation4], 1
    %496 = vsyncpa %s495, 1

</llo_original>
